<compile_context>
chip_gen: v6e
topology: v6e:2x2x1
jax: 0.10.0
libtpu: 0.0.40
codegen_flags: <defaults>
</compile_context>

<pallas_src>
import functools

import jax
import jax.numpy as jnp
from jax.experimental import pallas as pl
from jax.experimental.pallas import tpu as pltpu

_INV_SQRT2 = 0.7071067811865476


def _gelu_exact(x):
    # nn.GELU() default = exact erf-based GELU
    return 0.5 * x * (1.0 + jax.lax.erf(x * jnp.float32(_INV_SQRT2)))


def projection_head_kernel(x_ref, w1_ref, b1_ref, w2_ref, b2_ref,
                           gamma_ref, beta_ref, o_ref):
    x = x_ref[...]                                            # [TN, E] bf16 (pre-cast)

    # projected = x @ W1 + b1  (bf16 operands on the MXU, f32 accumulate)
    projected = jnp.dot(x, w1_ref[...],
                        preferred_element_type=jnp.float32) + b1_ref[...]

    # h = GELU(projected)   (exact erf, matches PyTorch nn.GELU() default)
    h = _gelu_exact(projected)

    # h = h @ W2 + b2
    h = jnp.dot(h.astype(jnp.bfloat16), w2_ref[...],
                preferred_element_type=jnp.float32) + b2_ref[...]

    # Dropout: inference-mode identity.
    # TODO(synk): training-mode dropout (pltpu.prng_seed + prng_random_bits mask
    #             + 1/(1-p) scale) not emitted.

    # residual
    y = h + projected

    # LayerNorm over last dim (eps = 1e-5, elementwise affine), two-pass variance.
    p = y.shape[-1]
    inv_p = jnp.float32(1.0 / p)
    mean = jnp.sum(y, axis=-1, keepdims=True) * inv_p
    d = y - mean
    var = jnp.sum(d * d, axis=-1, keepdims=True) * inv_p
    y_hat = d * jax.lax.rsqrt(var + jnp.float32(1e-5))
    o_ref[...] = (y_hat * gamma_ref[...] + beta_ref[...]).astype(o_ref.dtype)


def _round_up(a, b):
    return (a + b - 1) // b * b


def _choose_row_tile(n, target):
    """Row tile: multiple of 8, >=2 grid tiles when possible (megacore), <=~10% pad."""
    n_pad8 = _round_up(n, 8)
    tn = min(target, n_pad8)
    if n_pad8 >= 16:
        # Guarantee at least two row tiles so v7x can shard across both TensorCores.
        tn = min(tn, _round_up((n_pad8 + 1) // 2, 8))
    tn = max(8, (tn // 8) * 8)
    # Shrink tile until the padded row count wastes <= ~10% (avoids ~2x writeback
    # for awkward N in a mem-bound kernel).
    while tn > 8 and _round_up(n_pad8, tn) > 1.1 * n_pad8:
        tn -= 8
    return tn, _round_up(n_pad8, tn)


@functools.partial(jax.jit, static_argnames=("tn", "out_dtype"))
def projection_head(x, w1, b1, w2, b2, gamma, beta, *, tn=512,
                    out_dtype=jnp.float32):
    n, e = x.shape
    p = w1.shape[1]

    tile_n, n_pad = _choose_row_tile(n, tn)

    # bf16 MXU operands (halves x + weight DMA bytes); accumulation stays f32.
    x_bf = x.astype(jnp.bfloat16)
    if n_pad != n:
        x_bf = jnp.pad(x_bf, ((0, n_pad - n), (0, 0)))
    w1_bf = w1.astype(jnp.bfloat16)
    w2_bf = w2.astype(jnp.bfloat16)

    grid = (n_pad // tile_n,)
    out_bytes = jnp.dtype(out_dtype).itemsize

    # Honest VMEM estimate: single-buffered resident params + double-buffered
    # x/out tiles + live f32 intermediates. Request 2x, cap at 48 MiB so there is
    # headroom under v7x's 64 MiB physical VMEM.
    est = (w1_bf.size * 2 + w2_bf.size * 2 + 4 * p * 4          # resident params
           + 2 * tile_n * e * 2                                 # x tile (bf16, 2 bufs)
           + 2 * tile_n * p * out_bytes                         # out tile (2 bufs)
           + 4 * tile_n * p * 4)                                # live f32 intermediates
    vmem_limit = int(min(48 * 1024 * 1024, max(8 * 1024 * 1024, 2 * est)))

    cost = pl.CostEstimate(
        flops=2 * n_pad * (e * p + p * p),
        transcendentals=n_pad * p,                              # one erf per output elem
        bytes_accessed=(n_pad * e * 2 + e * p * 2 + p * p * 2 + 4 * p * 4
                        + n_pad * p * out_bytes),
    )

    resident = dict(pipeline_mode=pl.Buffered(1))  # constant blocks: single buffer

    out = pl.pallas_call(
        projection_head_kernel,
        out_shape=jax.ShapeDtypeStruct((n_pad, p), out_dtype),
        grid=grid,
        in_specs=[
            pl.BlockSpec((tile_n, e), lambda i: (i, 0)),            # x row tile (pipelined)
            pl.BlockSpec((e, p), lambda i: (0, 0), **resident),     # w1 (VMEM-resident)
            pl.BlockSpec((1, p), lambda i: (0, 0), **resident),     # b1
            pl.BlockSpec((p, p), lambda i: (0, 0), **resident),     # w2 (VMEM-resident)
            pl.BlockSpec((1, p), lambda i: (0, 0), **resident),     # b2
            pl.BlockSpec((1, p), lambda i: (0, 0), **resident),     # gamma
            pl.BlockSpec((1, p), lambda i: (0, 0), **resident),     # beta
        ],
        out_specs=pl.BlockSpec((tile_n, p), lambda i: (i, 0)),
        compiler_params=pltpu.CompilerParams(
            dimension_semantics=("parallel",),    # megacore sharding across row tiles
            vmem_limit_bytes=vmem_limit,
        ),
        cost_estimate=cost,
    )(x_bf, w1_bf, b1, w2_bf, b2, gamma, beta)

    return out[:n]


def projection_head_ref(x, w1, b1, w2, b2, gamma, beta):
    # Pure f32 reference (matches the PyTorch module in eval mode).
    projected = x @ w1 + b1
    h = _gelu_exact(projected)
    h = h @ w2 + b2
    y = h + projected
    mean = jnp.mean(y, axis=-1, keepdims=True)
    var = jnp.var(y, axis=-1, keepdims=True)
    return (y - mean) * jax.lax.rsqrt(var + 1e-5) * gamma + beta


if __name__ == "__main__":
    batch = 8
    embedding_dim = 32
    projection_dim = 256   # module default

    key = jax.random.PRNGKey(0)
    kx, k1, kb1, k2, kb2 = jax.random.split(key, 5)

    x = jax.random.normal(kx, (batch, embedding_dim), dtype=jnp.float32)

    # Deterministic parameter init (shapes follow nn.Linear / nn.LayerNorm).
    # Stored as [in, out] for direct x @ W in the kernel.
    w1 = jax.random.normal(k1, (embedding_dim, projection_dim), jnp.float32) * 0.05
    b1 = jax.random.normal(kb1, (1, projection_dim), jnp.float32) * 0.01
    w2 = jax.random.normal(k2, (projection_dim, projection_dim), jnp.float32) * 0.05
    b2 = jax.random.normal(kb2, (1, projection_dim), jnp.float32) * 0.01
    gamma = jnp.ones((1, projection_dim), jnp.float32)
    beta = jnp.zeros((1, projection_dim), jnp.float32)

    out = projection_head(x, w1, b1, w2, b2, gamma, beta)
    out = jax.block_until_ready(out)

    ref = projection_head_ref(x, w1, b1, w2, b2, gamma, beta)
    assert out.shape == (batch, projection_dim)
    # Tolerance relaxed vs. f32 reference because the matmuls use bf16 operands
    # (f32 accumulation); outputs are LayerNorm-scaled to ~unit magnitude.
    assert jnp.allclose(out, ref, atol=3e-2, rtol=3e-2), "mismatch vs reference"

    print("KERNEL_OK")
</pallas_src>

<mosaic_0001>
module attributes {stable_mosaic.version = 11 : i64} {
  func.func @projection_head_kernel(%arg0: i32, %arg1: memref<8x32xbf16, #tpu.memory_space<vmem>>, %arg2: memref<32x256xbf16, #tpu.memory_space<vmem>>, %arg3: memref<1x256xf32, #tpu.memory_space<vmem>>, %arg4: memref<256x256xbf16, #tpu.memory_space<vmem>>, %arg5: memref<1x256xf32, #tpu.memory_space<vmem>>, %arg6: memref<1x256xf32, #tpu.memory_space<vmem>>, %arg7: memref<1x256xf32, #tpu.memory_space<vmem>>, %arg8: memref<8x256xf32, #tpu.memory_space<vmem>>) attributes {dimension_semantics = [#tpu.dimension_semantics<parallel>], iteration_bounds = array<i64: 1>, scalar_prefetch = 0 : i64, scratch_operands = 0 : i64, tpu.core_type = #tpu.core_type<tc>, window_params = [{transform_indices = @transform_0, window_bounds = array<i64: 8, 32>}, {pipeline_mode = #tpu.pipeline_mode<synchronous>, transform_indices = @transform_1, window_bounds = array<i64: 32, 256>}, {pipeline_mode = #tpu.pipeline_mode<synchronous>, transform_indices = @transform_2, window_bounds = array<i64: 1, 256>}, {pipeline_mode = #tpu.pipeline_mode<synchronous>, transform_indices = @transform_3, window_bounds = array<i64: 256, 256>}, {pipeline_mode = #tpu.pipeline_mode<synchronous>, transform_indices = @transform_4, window_bounds = array<i64: 1, 256>}, {pipeline_mode = #tpu.pipeline_mode<synchronous>, transform_indices = @transform_5, window_bounds = array<i64: 1, 256>}, {pipeline_mode = #tpu.pipeline_mode<synchronous>, transform_indices = @transform_6, window_bounds = array<i64: 1, 256>}, {transform_indices = @transform_7, window_bounds = array<i64: 8, 256>}]} {
    %c0 = arith.constant 0 : index
    %c0_0 = arith.constant 0 : index
    %0 = vector.load %arg1[%c0, %c0_0] : memref<8x32xbf16, #tpu.memory_space<vmem>>, vector<8x32xbf16>
    %c0_1 = arith.constant 0 : index
    %c0_2 = arith.constant 0 : index
    %1 = vector.load %arg2[%c0_1, %c0_2] : memref<32x256xbf16, #tpu.memory_space<vmem>>, vector<32x256xbf16>
    %cst = arith.constant dense<0.000000e+00> : vector<8x256xf32>
    %2 = tpu.matmul %0, %1, %cst {dimension_numbers = #tpu.dot_dimension_numbers<[1], [0], [0], [1], [0, 0, 1, 1], [], []>} : vector<8x32xbf16>, vector<32x256xbf16>, vector<8x256xf32> -> vector<8x256xf32>
    %c0_3 = arith.constant 0 : index
    %c0_4 = arith.constant 0 : index
    %3 = vector.load %arg3[%c0_3, %c0_4] : memref<1x256xf32, #tpu.memory_space<vmem>>, vector<1x256xf32>
    %4 = vector.broadcast %3 : vector<1x256xf32> to vector<8x256xf32>
    %5 = arith.addf %2, %4 : vector<8x256xf32>
    %cst_5 = arith.constant 5.000000e-01 : f32
    %6 = vector.broadcast %cst_5 : f32 to vector<8x256xf32>
    %7 = arith.mulf %6, %5 : vector<8x256xf32>
    %cst_6 = arith.constant 0.707106769 : f32
    %8 = vector.broadcast %cst_6 : f32 to vector<8x256xf32>
    %9 = arith.mulf %5, %8 : vector<8x256xf32>
    %10 = math.erf %9 : vector<8x256xf32>
    %cst_7 = arith.constant 1.000000e+00 : f32
    %11 = vector.broadcast %cst_7 : f32 to vector<8x256xf32>
    %12 = arith.addf %11, %10 : vector<8x256xf32>
    %13 = arith.mulf %7, %12 : vector<8x256xf32>
    %14 = arith.truncf %13 : vector<8x256xf32> to vector<8x256xbf16>
    %c0_8 = arith.constant 0 : index
    %c0_9 = arith.constant 0 : index
    %15 = vector.load %arg4[%c0_8, %c0_9] : memref<256x256xbf16, #tpu.memory_space<vmem>>, vector<256x256xbf16>
    %cst_10 = arith.constant dense<0.000000e+00> : vector<8x256xf32>
    %16 = tpu.matmul %14, %15, %cst_10 {dimension_numbers = #tpu.dot_dimension_numbers<[1], [0], [0], [1], [0, 0, 1, 1], [], []>} : vector<8x256xbf16>, vector<256x256xbf16>, vector<8x256xf32> -> vector<8x256xf32>
    %c0_11 = arith.constant 0 : index
    %c0_12 = arith.constant 0 : index
    %17 = vector.load %arg5[%c0_11, %c0_12] : memref<1x256xf32, #tpu.memory_space<vmem>>, vector<1x256xf32>
    %18 = vector.broadcast %17 : vector<1x256xf32> to vector<8x256xf32>
    %19 = arith.addf %16, %18 : vector<8x256xf32>
    %20 = arith.addf %19, %5 : vector<8x256xf32>
    %cst_13 = arith.constant dense<0.000000e+00> : vector<8xf32>
    %21 = vector.multi_reduction <add>, %20, %cst_13 [1] : vector<8x256xf32> to vector<8xf32>
    %22 = vector.shape_cast %21 : vector<8xf32> to vector<8x1xf32>
    %cst_14 = arith.constant 3.906250e-03 : f32
    %23 = vector.broadcast %cst_14 : f32 to vector<8x1xf32>
    %24 = arith.mulf %22, %23 : vector<8x1xf32>
    %25 = vector.broadcast %24 : vector<8x1xf32> to vector<8x256xf32>
    %26 = arith.subf %20, %25 : vector<8x256xf32>
    %27 = arith.mulf %26, %26 : vector<8x256xf32>
    %cst_15 = arith.constant dense<0.000000e+00> : vector<8xf32>
    %28 = vector.multi_reduction <add>, %27, %cst_15 [1] : vector<8x256xf32> to vector<8xf32>
    %29 = vector.shape_cast %28 : vector<8xf32> to vector<8x1xf32>
    %cst_16 = arith.constant 3.906250e-03 : f32
    %30 = vector.broadcast %cst_16 : f32 to vector<8x1xf32>
    %31 = arith.mulf %29, %30 : vector<8x1xf32>
    %cst_17 = arith.constant 9.99999974E-6 : f32
    %32 = vector.broadcast %cst_17 : f32 to vector<8x1xf32>
    %33 = arith.addf %31, %32 : vector<8x1xf32>
    %34 = math.rsqrt %33 : vector<8x1xf32>
    %35 = vector.broadcast %34 : vector<8x1xf32> to vector<8x256xf32>
    %36 = arith.mulf %26, %35 : vector<8x256xf32>
    %c0_18 = arith.constant 0 : index
    %c0_19 = arith.constant 0 : index
    %37 = vector.load %arg6[%c0_18, %c0_19] : memref<1x256xf32, #tpu.memory_space<vmem>>, vector<1x256xf32>
    %38 = vector.broadcast %37 : vector<1x256xf32> to vector<8x256xf32>
    %39 = arith.mulf %36, %38 : vector<8x256xf32>
    %c0_20 = arith.constant 0 : index
    %c0_21 = arith.constant 0 : index
    %40 = vector.load %arg7[%c0_20, %c0_21] : memref<1x256xf32, #tpu.memory_space<vmem>>, vector<1x256xf32>
    %41 = vector.broadcast %40 : vector<1x256xf32> to vector<8x256xf32>
    %42 = arith.addf %39, %41 : vector<8x256xf32>
    %c0_22 = arith.constant 0 : index
    %c0_23 = arith.constant 0 : index
    %43 = vector.load %arg8[%c0_22, %c0_23] : memref<8x256xf32, #tpu.memory_space<vmem>>, vector<8x256xf32>
    tpu.vector_store %arg8[%c0_22, %c0_23], %42 {strides = array<i32>} : memref<8x256xf32, #tpu.memory_space<vmem>>, vector<8x256xf32>,
    return
  }
  func.func @transform_0(%arg0: i32) -> (i32, i32) {
    %c0_i32 = arith.constant 0 : i32
    %c0_i32_0 = arith.constant 0 : i32
    return %arg0, %c0_i32 : i32, i32
  }
  func.func @transform_1(%arg0: i32) -> (i32, i32) {
    %c0_i32 = arith.constant 0 : i32
    %c0_i32_0 = arith.constant 0 : i32
    %c0_i32_1 = arith.constant 0 : i32
    return %c0_i32, %c0_i32_0 : i32, i32
  }
  func.func @transform_2(%arg0: i32) -> (i32, i32) {
    %c0_i32 = arith.constant 0 : i32
    %c0_i32_0 = arith.constant 0 : i32
    %c0_i32_1 = arith.constant 0 : i32
    return %c0_i32, %c0_i32_0 : i32, i32
  }
  func.func @transform_3(%arg0: i32) -> (i32, i32) {
    %c0_i32 = arith.constant 0 : i32
    %c0_i32_0 = arith.constant 0 : i32
    %c0_i32_1 = arith.constant 0 : i32
    return %c0_i32, %c0_i32_0 : i32, i32
  }
  func.func @transform_4(%arg0: i32) -> (i32, i32) {
    %c0_i32 = arith.constant 0 : i32
    %c0_i32_0 = arith.constant 0 : i32
    %c0_i32_1 = arith.constant 0 : i32
    return %c0_i32, %c0_i32_0 : i32, i32
  }
  func.func @transform_5(%arg0: i32) -> (i32, i32) {
    %c0_i32 = arith.constant 0 : i32
    %c0_i32_0 = arith.constant 0 : i32
    %c0_i32_1 = arith.constant 0 : i32
    return %c0_i32, %c0_i32_0 : i32, i32
  }
  func.func @transform_6(%arg0: i32) -> (i32, i32) {
    %c0_i32 = arith.constant 0 : i32
    %c0_i32_0 = arith.constant 0 : i32
    %c0_i32_1 = arith.constant 0 : i32
    return %c0_i32, %c0_i32_0 : i32, i32
  }
  func.func @transform_7(%arg0: i32) -> (i32, i32) {
    %c0_i32 = arith.constant 0 : i32
    %c0_i32_0 = arith.constant 0 : i32
    return %arg0, %c0_i32 : i32, i32
  }
}

</mosaic_0001>

<llo_original>
// kernel: projection_head.1
$region0: #{projection_head.1}
  #allocation0 [shape = 'u32[]', space=smem, size = 0x4, offset = 0x4, fixed_abs, tag = 'smem constant byte address 0x4 - core index']
  #allocation1 [shape = 'u32[144,128]{1,0:T(1,128)}', space=vmem, size = 0x12000, scoped, tag = 'internal scratch']
  %s0 = inlined_call_operand.vmem [shape: bf16[8,32], index: 0, kind: input, shape index: {}]
  %s1 = inlined_call_operand.vmem [shape: bf16[32,256], index: 1, kind: input, shape index: {}]
  %s2 = inlined_call_operand.vmem [shape: f32[1,256], index: 2, kind: input, shape index: {}]
  %s3 = inlined_call_operand.vmem [shape: bf16[256,256], index: 3, kind: input, shape index: {}]
  %s4 = inlined_call_operand.vmem [shape: f32[1,256], index: 4, kind: input, shape index: {}]
  %s5 = inlined_call_operand.vmem [shape: f32[1,256], index: 5, kind: input, shape index: {}]
  %s6 = inlined_call_operand.vmem [shape: f32[1,256], index: 6, kind: input, shape index: {}]
  %s7 = inlined_call_operand.hbm [shape: f32[8,256], index: 7, kind: output, shape index: {}]
  %s8 = sld [smem:[#allocation0]]
  $region38: #{projection_head.1} parent=0
    _
  %s10 = ssub.s32 1, %s8
  %s11 = scalar_select 0, %s10, %s8
  $region1: #{projection_head.1} parent=0
    #allocation2 [shape = 'u8[8192]{0}', space=vmem, size = 0x2000, scoped, tag = 'output window, operand 0, single buffered']
    #allocation3 [shape = 's32[1]{0}', space=sflag, size = 0x4, scoped, tag = 'scoped memory for projection_head.1']
    %12 = vsyncpa [#allocation3], 0
    // Predicated region
    $region2: #{projection_head.1} parent=1 // pred_check
      _
    $region3: #{projection_head.1} parent=1 // pred_check_branch
      %14 = sbr.rel (0) target = $region5
    $region4: #{projection_head.1} parent=1 // pred_region
      _
    $region5: #{projection_head.1} parent=1 // pred_fallthru
      _
    // Predicated region
    $region6: #{projection_head.1} parent=1 // pred_check
      _
    $region7: #{projection_head.1} parent=1 // pred_check_branch
      %16 = sbr.rel (0) target = $region9
    $region8: #{projection_head.1} parent=1 // pred_region
      _
    $region9: #{projection_head.1} parent=1 // pred_fallthru
      _
    // Predicated region
    $region10: #{projection_head.1} parent=1 // pred_check
      _
    $region11: #{projection_head.1} parent=1 // pred_check_branch
      %18 = sbr.rel (0) target = $region13
    $region12: #{projection_head.1} parent=1 // pred_region
      _
    $region13: #{projection_head.1} parent=1 // pred_fallthru
      _
    // Predicated region
    $region14: #{projection_head.1} parent=1 // pred_check
      _
    $region15: #{projection_head.1} parent=1 // pred_check_branch
      %20 = sbr.rel (0) target = $region17
    $region16: #{projection_head.1} parent=1 // pred_region
      _
    $region17: #{projection_head.1} parent=1 // pred_fallthru
      _
    // Predicated region
    $region18: #{projection_head.1} parent=1 // pred_check
      _
    $region19: #{projection_head.1} parent=1 // pred_check_branch
      %22 = sbr.rel (0) target = $region21
    $region20: #{projection_head.1} parent=1 // pred_region
      _
    $region21: #{projection_head.1} parent=1 // pred_fallthru
      _
    // Predicated region
    $region22: #{projection_head.1} parent=1 // pred_check
      _
    $region23: #{projection_head.1} parent=1 // pred_check_branch
      %24 = sbr.rel (0) target = $region25
    $region24: #{projection_head.1} parent=1 // pred_region
      _
    $region25: #{projection_head.1} parent=1 // pred_fallthru
      _
    // Predicated region
    $region26: #{projection_head.1} parent=1 // pred_check
      _
    $region27: #{projection_head.1} parent=1 // pred_check_branch
      %26 = sbr.rel (0) target = $region29
    $region28: #{projection_head.1} parent=1 // pred_region
      _
    $region29: #{projection_head.1} parent=1 // pred_fallthru
      _
    %v28 = vld [vmem:[%s0] sm:$0xf]
    %v29 = vld [vmem:[%s1] sm:$0xff]
    %v30 = vld [vmem:[%s1 + $0x8] sm:$0xff]
    %v31 = vld [vmem:[%s1 + $0x10] sm:$0xff]
    %v32 = vld [vmem:[%s1 + $0x18] sm:$0xff]
    %v33 = vld [vmem:[%s2] sm:$0x3]
    %v35 = vlaneseq
    %v36 = vshrl.u32 %v35, 7
    %v37 = vsub.s32 0, %v36
    %v38 = vrot.slane %v33, %v37
    %v39 = vlaneseq
    %v40 = vshrl.u32 %v39, 7
    %v41 = vsub.s32 1, %v40
    %v42 = vrot.slane %v33, %v41
    %v49 = vunpack.c.l.b16 %v29
    %v50 = vunpack.c.h.b16 %v29
    %v51 = vunpack.c.l.b16 %v30
    %v52 = vunpack.c.h.b16 %v30
    %v53 = vunpack.c.l.b16 %v31
    %v54 = vunpack.c.h.b16 %v31
    %v55 = vunpack.c.l.b16 %v32
    %v56 = vunpack.c.h.b16 %v32
    %v57 = vpack.c.b16 %v51, %v49
    %v58 = vpack.c.b16 %v52, %v50
    %v59 = vpack.c.b16 %v55, %v53
    %v60 = vpack.c.b16 %v56, %v54
    %vm65 = vcmask 261120
    %v67 = vsel %vm65, %v28, 0
    %69 = vmatprep.subr.bf16.mxu0 0
    %70 = vmatpush1.bf16.msra.mxu0 0
    %71 = vmatprep.subr.bf16.mxu0 0
    %72 = vmatpush1.bf16.msra.mxu0 0
    %73 = vmatprep.subr.bf16.mxu0 0
    %74 = vmatpush1.bf16.msra.mxu0 0
    %75 = vmatprep.subr.bf16.mxu0 0
    %76 = vmatpush1.bf16.msra.mxu0 0
    %77 = vmatprep.subr.bf16.mxu0 0
    %78 = vmatpush1.bf16.msra.mxu0 0
    %79 = vmatprep.subr.bf16.mxu0 0
    %80 = vmatpush1.bf16.msra.mxu0 0
    %81 = vmatprep.subr.bf16.mxu0 %v60
    %82 = vmatpush1.bf16.msra.mxu0 %v59
    %83 = vmatprep.subr.bf16.mxu0 %v58
    %84 = vmatpush1.bf16.msra.mxu0 %v57
    %85 = vmatprep.subr.bf16.mxu0 0
    %86 = vmatpush2.bf16.msra.mxu0 0
    %87 = vmatprep.subr.bf16.mxu0 0
    %88 = vmatpush2.bf16.msra.mxu0 0
    %89 = vmatprep.subr.bf16.mxu0 0
    %90 = vmatpush2.bf16.msra.mxu0 0
    %91 = vmatprep.subr.bf16.mxu0 0
    %92 = vmatpush2.bf16.msra.mxu0 0
    %93 = vmatprep.subr.bf16.mxu0 0
    %94 = vmatpush2.bf16.msra.mxu0 0
    %95 = vmatprep.subr.bf16.mxu0 0
    %96 = vmatpush2.bf16.msra.mxu0 0
    %97 = vmatprep.subr.bf16.mxu0 0
    %98 = vmatpush2.bf16.msra.mxu0 0
    %99 = vmatprep.subr.bf16.mxu0 0
    %100 = vmatpush2.bf16.msra.mxu0 0
    %101 = vmatprep.mubr.bf16.mxu0 0
    %102 = vmatmul.mubr.bf16.gmra.mxu0 %v67
    %v103 = vpop.f32.mrf.mxu0
    %v104 = vadd.f32 %v38, %v103
    %v105 = vpop.f32.mrf.mxu0
    %v106 = vadd.f32 %v42, %v105
    %v107 = vpop.f32.mrf.mxu0
    %v108 = vpop.f32.mrf.mxu0
    %109 = vdwg.mxu0
    %v110 = vmul.f32 %v104, 0.5
    %v111 = vmul.f32 %v106, 0.5
    %v112 = vmul.f32 %v104, 0.70710677
    %v113 = vmul.f32 %v106, 0.70710677
    %v114 = verf.f32.pop %v112
    %v115 = verf.f32.pop %v113
    %v116 = vadd.f32 %v114, 1.0
    %v117 = vadd.f32 %v115, 1.0
    %v118 = vmul.f32 %v110, %v116
    %v119 = vmul.f32 %v111, %v117
    %v120 = vpack.c.bf16 %v118, %v118
    %v121 = vpack.c.bf16 %v119, %v119
    %v122 = vld [vmem:[%s3] sm:$0xff]
    %v123 = vld [vmem:[%s3 + $0x8] sm:$0xff]
    %v124 = vld [vmem:[%s3 + $0x10] sm:$0xff]
    %v125 = vld [vmem:[%s3 + $0x18] sm:$0xff]
    %v126 = vld [vmem:[%s3 + $0x20] sm:$0xff]
    %v127 = vld [vmem:[%s3 + $0x28] sm:$0xff]
    %v128 = vld [vmem:[%s3 + $0x30] sm:$0xff]
    %v129 = vld [vmem:[%s3 + $0x38] sm:$0xff]
    %v130 = vld [vmem:[%s3 + $0x40] sm:$0xff]
    %v131 = vld [vmem:[%s3 + $0x48] sm:$0xff]
    %v132 = vld [vmem:[%s3 + $0x50] sm:$0xff]
    %v133 = vld [vmem:[%s3 + $0x58] sm:$0xff]
    %v134 = vld [vmem:[%s3 + $0x60] sm:$0xff]
    %v135 = vld [vmem:[%s3 + $0x68] sm:$0xff]
    %v136 = vld [vmem:[%s3 + $0x70] sm:$0xff]
    %v137 = vld [vmem:[%s3 + $0x78] sm:$0xff]
    %v138 = vld [vmem:[%s3 + $0x80] sm:$0xff]
    %v139 = vld [vmem:[%s3 + $0x88] sm:$0xff]
    %v140 = vld [vmem:[%s3 + $0x90] sm:$0xff]
    %v141 = vld [vmem:[%s3 + $0x98] sm:$0xff]
    %v142 = vld [vmem:[%s3 + $0xa0] sm:$0xff]
    %v143 = vld [vmem:[%s3 + $0xa8] sm:$0xff]
    %v144 = vld [vmem:[%s3 + $0xb0] sm:$0xff]
    %v145 = vld [vmem:[%s3 + $0xb8] sm:$0xff]
    %v146 = vld [vmem:[%s3 + $0xc0] sm:$0xff]
    %v147 = vld [vmem:[%s3 + $0xc8] sm:$0xff]
    %v148 = vld [vmem:[%s3 + $0xd0] sm:$0xff]
    %v149 = vld [vmem:[%s3 + $0xd8] sm:$0xff]
    %v150 = vld [vmem:[%s3 + $0xe0] sm:$0xff]
    %v151 = vld [vmem:[%s3 + $0xe8] sm:$0xff]
    %v152 = vld [vmem:[%s3 + $0xf0] sm:$0xff]
    %v153 = vld [vmem:[%s3 + $0xf8] sm:$0xff]
    %v154 = vld [vmem:[%s4] sm:$0x3]
    %v156 = vlaneseq
    %v157 = vshrl.u32 %v156, 7
    %v158 = vsub.s32 0, %v157
    %v159 = vrot.slane %v154, %v158
    %v160 = vlaneseq
    %v161 = vshrl.u32 %v160, 7
    %v162 = vsub.s32 1, %v161
    %v163 = vrot.slane %v154, %v162
    %v198 = vunpack.c.l.b16 %v122
    %v199 = vunpack.c.h.b16 %v122
    %v200 = vunpack.c.l.b16 %v123
    %v201 = vunpack.c.h.b16 %v123
    %v202 = vunpack.c.l.b16 %v124
    %v203 = vunpack.c.h.b16 %v124
    %v204 = vunpack.c.l.b16 %v125
    %v205 = vunpack.c.h.b16 %v125
    %v206 = vunpack.c.l.b16 %v126
    %v207 = vunpack.c.h.b16 %v126
    %v208 = vunpack.c.l.b16 %v127
    %v209 = vunpack.c.h.b16 %v127
    %v210 = vunpack.c.l.b16 %v128
    %v211 = vunpack.c.h.b16 %v128
    %v212 = vunpack.c.l.b16 %v129
    %v213 = vunpack.c.h.b16 %v129
    %v214 = vunpack.c.l.b16 %v130
    %v215 = vunpack.c.h.b16 %v130
    %v216 = vunpack.c.l.b16 %v131
    %v217 = vunpack.c.h.b16 %v131
    %v218 = vunpack.c.l.b16 %v132
    %v219 = vunpack.c.h.b16 %v132
    %v220 = vunpack.c.l.b16 %v133
    %v221 = vunpack.c.h.b16 %v133
    %v222 = vunpack.c.l.b16 %v134
    %v223 = vunpack.c.h.b16 %v134
    %v224 = vunpack.c.l.b16 %v135
    %v225 = vunpack.c.h.b16 %v135
    %v226 = vunpack.c.l.b16 %v136
    %v227 = vunpack.c.h.b16 %v136
    %v228 = vunpack.c.l.b16 %v137
    %v229 = vunpack.c.h.b16 %v137
    %v230 = vunpack.c.l.b16 %v138
    %v231 = vunpack.c.h.b16 %v138
    %v232 = vunpack.c.l.b16 %v139
    %v233 = vunpack.c.h.b16 %v139
    %v234 = vunpack.c.l.b16 %v140
    %v235 = vunpack.c.h.b16 %v140
    %v236 = vunpack.c.l.b16 %v141
    %v237 = vunpack.c.h.b16 %v141
    %v238 = vunpack.c.l.b16 %v142
    %v239 = vunpack.c.h.b16 %v142
    %v240 = vunpack.c.l.b16 %v143
    %v241 = vunpack.c.h.b16 %v143
    %v242 = vunpack.c.l.b16 %v144
    %v243 = vunpack.c.h.b16 %v144
    %v244 = vunpack.c.l.b16 %v145
    %v245 = vunpack.c.h.b16 %v145
    %v246 = vunpack.c.l.b16 %v146
    %v247 = vunpack.c.h.b16 %v146
    %v248 = vunpack.c.l.b16 %v147
    %v249 = vunpack.c.h.b16 %v147
    %v250 = vunpack.c.l.b16 %v148
    %v251 = vunpack.c.h.b16 %v148
    %v252 = vunpack.c.l.b16 %v149
    %v253 = vunpack.c.h.b16 %v149
    %v254 = vunpack.c.l.b16 %v150
    %v255 = vunpack.c.h.b16 %v150
    %v256 = vunpack.c.l.b16 %v151
    %v257 = vunpack.c.h.b16 %v151
    %v258 = vunpack.c.l.b16 %v152
    %v259 = vunpack.c.h.b16 %v152
    %v260 = vunpack.c.l.b16 %v153
    %v261 = vunpack.c.h.b16 %v153
    %v262 = vpack.c.b16 %v200, %v198
    %v263 = vpack.c.b16 %v201, %v199
    %v264 = vpack.c.b16 %v204, %v202
    %v265 = vpack.c.b16 %v205, %v203
    %v266 = vpack.c.b16 %v208, %v206
    %v267 = vpack.c.b16 %v209, %v207
    %v268 = vpack.c.b16 %v212, %v210
    %v269 = vpack.c.b16 %v213, %v211
    %v270 = vpack.c.b16 %v216, %v214
    %v271 = vpack.c.b16 %v217, %v215
    %v272 = vpack.c.b16 %v220, %v218
    %v273 = vpack.c.b16 %v221, %v219
    %v274 = vpack.c.b16 %v224, %v222
    %v275 = vpack.c.b16 %v225, %v223
    %v276 = vpack.c.b16 %v228, %v226
    %v277 = vpack.c.b16 %v229, %v227
    %v278 = vpack.c.b16 %v232, %v230
    %v279 = vpack.c.b16 %v233, %v231
    %v280 = vpack.c.b16 %v236, %v234
    %v281 = vpack.c.b16 %v237, %v235
    %v282 = vpack.c.b16 %v240, %v238
    %v283 = vpack.c.b16 %v241, %v239
    %v284 = vpack.c.b16 %v244, %v242
    %v285 = vpack.c.b16 %v245, %v243
    %v286 = vpack.c.b16 %v248, %v246
    %v287 = vpack.c.b16 %v249, %v247
    %v288 = vpack.c.b16 %v252, %v250
    %v289 = vpack.c.b16 %v253, %v251
    %v290 = vpack.c.b16 %v256, %v254
    %v291 = vpack.c.b16 %v257, %v255
    %v292 = vpack.c.b16 %v260, %v258
    %v293 = vpack.c.b16 %v261, %v259
    %326 = vmatprep.subr.bf16.mxu0 %v277
    %327 = vmatpush1.bf16.msra.mxu0 %v276
    %328 = vmatprep.subr.bf16.mxu0 %v275
    %329 = vmatpush1.bf16.msra.mxu0 %v274
    %330 = vmatprep.subr.bf16.mxu0 %v273
    %331 = vmatpush1.bf16.msra.mxu0 %v272
    %332 = vmatprep.subr.bf16.mxu0 %v271
    %333 = vmatpush1.bf16.msra.mxu0 %v270
    %334 = vmatprep.subr.bf16.mxu0 %v269
    %335 = vmatpush1.bf16.msra.mxu0 %v268
    %336 = vmatprep.subr.bf16.mxu0 %v267
    %337 = vmatpush1.bf16.msra.mxu0 %v266
    %338 = vmatprep.subr.bf16.mxu0 %v265
    %339 = vmatpush1.bf16.msra.mxu0 %v264
    %340 = vmatprep.subr.bf16.mxu0 %v263
    %341 = vmatpush1.bf16.msra.mxu0 %v262
    %342 = vmatprep.subr.bf16.mxu0 %v293
    %343 = vmatpush2.bf16.msra.mxu0 %v292
    %344 = vmatprep.subr.bf16.mxu0 %v291
    %345 = vmatpush2.bf16.msra.mxu0 %v290
    %346 = vmatprep.subr.bf16.mxu0 %v289
    %347 = vmatpush2.bf16.msra.mxu0 %v288
    %348 = vmatprep.subr.bf16.mxu0 %v287
    %349 = vmatpush2.bf16.msra.mxu0 %v286
    %350 = vmatprep.subr.bf16.mxu0 %v285
    %351 = vmatpush2.bf16.msra.mxu0 %v284
    %352 = vmatprep.subr.bf16.mxu0 %v283
    %353 = vmatpush2.bf16.msra.mxu0 %v282
    %354 = vmatprep.subr.bf16.mxu0 %v281
    %355 = vmatpush2.bf16.msra.mxu0 %v280
    %356 = vmatprep.subr.bf16.mxu0 %v279
    %357 = vmatpush2.bf16.msra.mxu0 %v278
    %358 = vmatprep.mubr.bf16.mxu0 %v121
    %359 = vmatmul.mubr.bf16.gmra.mxu0 %v120
    %v360 = vpop.f32.mrf.mxu0
    %v361 = vadd.f32 %v159, %v360
    %v362 = vpop.f32.mrf.mxu0
    %v363 = vadd.f32 %v163, %v362
    %v364 = vpop.f32.mrf.mxu0
    %v365 = vpop.f32.mrf.mxu0
    %366 = vdwg.mxu0
    %v367 = vadd.f32 %v361, %v104
    %v368 = vadd.f32 %v363, %v106
    %v369 = vadd.f32 %v367, %v368
    %370 = vadd.xlane.f32.xlu0 %v369
    %v371 = vpop.xlane.xlu0 %370
    %v372 = vmul.f32 %v371, 0.00390625
    %v373 = vsub.f32 %v367, %v372
    %v374 = vsub.f32 %v368, %v372
    %v375 = vmul.f32 %v373, %v373
    %v376 = vmul.f32 %v374, %v374
    %v377 = vadd.f32 %v375, %v376
    %378 = vadd.xlane.f32.xlu0 %v377
    %v379 = vpop.xlane.xlu0 %378
    %v380 = vmul.f32 %v379, 0.00390625
    %v381 = vadd.f32 %v380, 1e-05
    %v382 = vrsqrt.pop %v381
    %v383 = vmul.f32 %v373, %v382
    %v384 = vmul.f32 %v374, %v382
    %v385 = vld [vmem:[%s5] sm:$0x3]
    %v387 = vlaneseq
    %v388 = vshrl.u32 %v387, 7
    %v389 = vsub.s32 0, %v388
    %v390 = vrot.slane %v385, %v389
    %v391 = vlaneseq
    %v392 = vshrl.u32 %v391, 7
    %v393 = vsub.s32 1, %v392
    %v394 = vrot.slane %v385, %v393
    %v397 = vmul.f32 %v383, %v390
    %v398 = vmul.f32 %v384, %v394
    %v399 = vld [vmem:[%s6] sm:$0x3]
    %v401 = vlaneseq
    %v402 = vshrl.u32 %v401, 7
    %v403 = vsub.s32 0, %v402
    %v404 = vrot.slane %v399, %v403
    %v405 = vlaneseq
    %v406 = vshrl.u32 %v405, 7
    %v407 = vsub.s32 1, %v406
    %v408 = vrot.slane %v399, %v407
    %v411 = vadd.f32 %v397, %v404
    %v412 = vadd.f32 %v398, %v408
    %413 = vst [vmem:[#allocation2] sm:$0xff] %v411
    %414 = vst [vmem:[#allocation2 + $0x8] sm:$0xff] %v412
    // Predicated region
    $region30: #{projection_head.1} parent=1 // pred_check
      _
    $region31: #{projection_head.1} parent=1 // pred_check_branch
      %416 = sbr.rel (0) target = $region33
    $region32: #{projection_head.1} parent=1 // pred_region
      %s418 = ssub.s32 256, 256
      %419 = vsyncadd [#allocation3], %s418
      %s421 = sshll.u32 [#allocation2], 4
      %s422 = int_to_ptr.vmem [resolvable:$true] %s421
      %424 = dma.vmem_to_hbm [thread:$0]  %s422, 256, %s7, [#allocation3]
    $region33: #{projection_head.1} parent=1 // pred_fallthru
      _
    // Predicated region
    $region34: #{projection_head.1} parent=1 // pred_check
      _
    $region35: #{projection_head.1} parent=1 // pred_check_branch
      %426 = sbr.rel (0) target = $region37
    $region36: #{projection_head.1} parent=1 // pred_region
      %427 = dma.done [#allocation3], 256
    $region37: #{projection_head.1} parent=1 // pred_fallthru
      _
    %428 = vsyncpa [#allocation3], 1

</llo_original>
